<compile_context>
chip_gen: v6e
topology: v6e:2x2x1
jax: 0.10.0
libtpu: 0.0.40
codegen_flags: <defaults>
</compile_context>

<pallas_src>
import jax
import jax.numpy as jnp
from jax.experimental import pallas as pl
from jax.experimental.pallas import tpu as pltpu


# ---------------------------------------------------------------------------
# Kernel: single whole-array HBM -> HBM DMA (identity copy, no VMEM staging).
# ---------------------------------------------------------------------------
def _dma_copy_kernel(x_hbm_ref, o_hbm_ref, sem):
    cp = pltpu.make_async_copy(x_hbm_ref, o_hbm_ref, sem)
    cp.start()
    cp.wait()


def _hbm_copy(x):
    """Identity copy of `x` done as one HBM->HBM DMA inside a Pallas kernel."""
    return pl.pallas_call(
        _dma_copy_kernel,
        out_shape=jax.ShapeDtypeStruct(x.shape, x.dtype),
        in_specs=[pl.BlockSpec(memory_space=pl.ANY)],   # raw HBM ref, no auto-DMA
        out_specs=pl.BlockSpec(memory_space=pl.ANY),    # raw HBM ref, no auto-DMA
        scratch_shapes=[pltpu.SemaphoreType.DMA],
        compiler_params=pltpu.CompilerParams(has_side_effects=True),
    )(x)


# ---------------------------------------------------------------------------
# Module-equivalent wrappers.
# ---------------------------------------------------------------------------
def patch1d_forward(x, n, L, use_kernel=True):
    """Patch1D.forward: [B, L] -> [B, L//n, n].

    `use_kernel=False` is the production path: a contiguous reshape is
    metadata-only, so no kernel (and no HBM traffic) is needed at all.
    """
    B = x.shape[0]
    assert x.shape == (B, L), f"expected x of shape [B, {L}], got {x.shape}"
    assert L % n == 0, "L must be divisible by n"
    if not use_kernel:
        return x.reshape(B, L // n, n)          # metadata-only, zero traffic
    out2d = _hbm_copy(x)                        # one HBM->HBM DMA
    return out2d.reshape(B, L // n, n)          # metadata-only view


def patch1d_reverse(x, n, L, use_kernel=True):
    """Patch1D.reverse: [B, L//n, n] -> [B, L]."""
    B = x.shape[0]
    assert L % n == 0, "L must be divisible by n"
    assert x.shape == (B, L // n, n), (
        f"expected x of shape [B, {L // n}, {n}], got {x.shape}"
    )
    x2d = x.reshape(B, L)                       # metadata-only view
    if not use_kernel:
        return x2d
    return _hbm_copy(x2d)                       # one HBM->HBM DMA


# ---------------------------------------------------------------------------
# Self-test.
# ---------------------------------------------------------------------------
if __name__ == "__main__":
    key = jax.random.PRNGKey(0)

    # Small config consistent with the module: Patch1D(n, L), input [B, L].
    n, L, B = 4, 16, 2
    x = jax.random.normal(key, (B, L), dtype=jnp.float32)

    out = jax.block_until_ready(patch1d_forward(x, n, L))
    ref = x.reshape(B, L // n, n)
    assert out.shape == (B, L // n, n)
    assert out.dtype == x.dtype
    assert jnp.array_equal(out, ref)

    back = jax.block_until_ready(patch1d_reverse(out, n, L))
    assert back.shape == (B, L)
    assert jnp.array_equal(back, x)

    # Second case: different dtype / shape (odd-ish B, L not a multiple of 128)
    # — the DMA path is shape- and dtype-agnostic, no tiling rules to satisfy.
    n2, L2, B2 = 8, 256, 13
    x2 = jax.random.normal(jax.random.PRNGKey(1), (B2, L2), dtype=jnp.bfloat16)
    out2 = jax.block_until_ready(patch1d_forward(x2, n2, L2))
    assert jnp.array_equal(out2, x2.reshape(B2, L2 // n2, n2))
    back2 = jax.block_until_ready(patch1d_reverse(out2, n2, L2))
    assert jnp.array_equal(back2, x2)

    # Production (no-kernel) path agrees as well.
    assert jnp.array_equal(patch1d_forward(x, n, L, use_kernel=False), ref)

    print("KERNEL_OK")
</pallas_src>

<mosaic_0001>
module attributes {stable_mosaic.version = 11 : i64} {
  func.func @_dma_copy_kernel(%arg0: memref<2x16xf32, #tpu.memory_space<any>>, %arg1: memref<2x16xf32, #tpu.memory_space<any>>, %arg2: memref<!tpu.dma_semaphore, #tpu.memory_space<semaphore_mem>>) attributes {dimension_semantics = [], scalar_prefetch = 0 : i64, scratch_operands = 1 : i64, tpu.core_type = #tpu.core_type<tc>} {
    tpu.enqueue_dma source(%arg0 : memref<2x16xf32, #tpu.memory_space<any>>) target(%arg1 : memref<2x16xf32, #tpu.memory_space<any>>) target_semaphore(%arg2 : memref<!tpu.dma_semaphore, #tpu.memory_space<semaphore_mem>>)
    tpu.wait_dma2 semaphore(%arg2 : memref<!tpu.dma_semaphore, #tpu.memory_space<semaphore_mem>>) src(%arg0 : memref<2x16xf32, #tpu.memory_space<any>>) dst(%arg1 : memref<2x16xf32, #tpu.memory_space<any>>)
    return
  }
}

</mosaic_0001>

<llo_original>
// kernel: tpu_custom_call.1
$region0: #{tpu_custom_call.1}
  #allocation0 [shape = 'u32[]', space=smem, size = 0x4, offset = 0x4, fixed_abs, tag = 'smem constant byte address 0x4 - core index']
  #allocation1 [shape = 'u32[144,128]{1,0:T(1,128)}', space=vmem, size = 0x12000, scoped, tag = 'internal scratch']
  #allocation2 [shape = 's32[1]{0}', space=sflag, size = 0x4, scoped, tag = 'scratch operand']
  #allocation3 [shape = 's32[]', space=sflag, size = 0x4, offset = 0, fixed_abs, tag = 'sflag constant byte address 0x0 - dummy sync flag']
  #allocation4 [shape = 'u32[0]{0}', space=smem, size = 0, offset = 0, fixed_abs, tag = 'smem constant byte address 0x0 - null']
  %s0 = inlined_call_operand.hbm [shape: f32[2,16], index: 0, kind: input, shape index: {}]
  %s1 = inlined_call_operand.hbm [shape: f32[2,16], index: 1, kind: output, shape index: {}]
  %s2 = sld [smem:[#allocation0]]
  $region2: #{tpu_custom_call.1} parent=0
    _
  %s4 = ssub.s32 1, %s2
  %s5 = scalar_select 0, %s4, %s2
  %s7 = sshll.u32 1, 14
  %s8 = sxor.u32 4294967295, %s7
  %12 = dma.general %s0, 32, %s1, [#allocation2], 131072, [#allocation4], 0, 0
  %s13 = smul.u32 2, 1
  %s14 = sshll.u32 %s13, 4
  %15 = dma.done [#allocation2], %s14
  %16 = vsyncmov [#allocation2]
  %s17 = vpop.sfrf %16
  %p18 = scmp.eq.s32.totalorder %s17, 0
  %p19 = pneg %p18
  %21 = shalt.err (%p19)

</llo_original>
